<compile_context>
chip_gen: v7x
topology: tpu7x:2x2x1
jax: 0.10.0
libtpu: 0.0.40
codegen_flags: <defaults>
</compile_context>

<pallas_src>
import functools
import math

import jax
import jax.numpy as jnp
from jax.experimental import pallas as pl
from jax.experimental.pallas import tpu as pltpu

_SQRT_2_OVER_PI = math.sqrt(2.0 / math.pi)
_OUT_PAD = 128          # lane-dense padded width for the scalar value head
_LN_EPS = 1e-5          # torch.nn.LayerNorm default eps


def _new_gelu(x):
    return 0.5 * x * (1.0 + jnp.tanh(_SQRT_2_OVER_PI * (x + 0.044715 * x * x * x)))


def _value_kernel(x_ref, g_ref, beta_ref, w1_ref, b1_ref, w2_ref, b2_ref,
                  w3_ref, b3_ref, out_ref, *, eps):
    x = x_ref[...].astype(jnp.float32)

    # LayerNorm over the feature (last) axis.
    mean = jnp.mean(x, axis=-1, keepdims=True)
    var = jnp.mean(jnp.square(x - mean), axis=-1, keepdims=True)
    xn = (x - mean) * jax.lax.rsqrt(var + eps)
    xn = xn * g_ref[...] + beta_ref[...]

    # Hoist biases once into locals (JAX does not CSE broadcast_in_dim).
    b1 = b1_ref[...]
    b2 = b2_ref[...]
    b3 = b3_ref[...]

    # MLP with tanh-GELU activations; f32 accumulation on the MXU.
    h1 = _new_gelu(jnp.dot(xn, w1_ref[...], preferred_element_type=jnp.float32) + b1)
    h2 = _new_gelu(jnp.dot(h1, w2_ref[...], preferred_element_type=jnp.float32) + b2)

    # Value head, padded to _OUT_PAD lanes (columns >= 1 carry zero weights) so
    # the store is a full unmasked lane-dense vst.
    v = jnp.dot(h2, w3_ref[...], preferred_element_type=jnp.float32) + b3
    out_ref[...] = v.astype(out_ref.dtype)


def _round_up(x, m):
    return ((x + m - 1) // m) * m


def ppo_valuenet_forward(x, params, eps=_LN_EPS):
    """PPO_ValueNet forward.  x: (B, input_dim) f32  ->  (B, 1) f32."""
    B, D = x.shape
    H = params["w1"].shape[1]

    # Lane-dense value head: pad (H, 1) weights / (1, 1) bias to 128 columns.
    w3 = params["w3"]
    b3 = params["b3"]
    w3p = jnp.zeros((H, _OUT_PAD), jnp.float32).at[:, : w3.shape[1]].set(w3)
    b3p = jnp.zeros((1, _OUT_PAD), jnp.float32).at[:, : b3.shape[1]].set(b3)

    # Batch tiling: TB rows per grid step (sublane-aligned); pad batch with zeros.
    TB = min(256, _round_up(B, 8))
    B_pad = _round_up(B, TB)
    xp = x if B_pad == B else jnp.pad(x, ((0, B_pad - B), (0, 0)))
    grid = (B_pad // TB,)

    def row_map(i):        # batch-tiled arrays
        return (i, 0)

    def const_map(i):      # weights / biases stay resident across the grid
        return (0, 0)

    flops = 2 * B_pad * (D * H + H * H + H * _OUT_PAD) + 12 * B_pad * (D + 2 * H)
    transcendentals = 2 * B_pad * H  # tanh in the two NewGELUs
    bytes_accessed = 4 * (B_pad * D + D * H + H * H + H * _OUT_PAD
                          + 2 * D + 2 * H + _OUT_PAD + B_pad * _OUT_PAD)

    out = pl.pallas_call(
        functools.partial(_value_kernel, eps=eps),
        out_shape=jax.ShapeDtypeStruct((B_pad, _OUT_PAD), jnp.float32),
        grid=grid,
        in_specs=[
            pl.BlockSpec((TB, D), row_map),           # x
            pl.BlockSpec((1, D), const_map),          # gamma
            pl.BlockSpec((1, D), const_map),          # beta
            pl.BlockSpec((D, H), const_map),          # w1
            pl.BlockSpec((1, H), const_map),          # b1
            pl.BlockSpec((H, H), const_map),          # w2
            pl.BlockSpec((1, H), const_map),          # b2
            pl.BlockSpec((H, _OUT_PAD), const_map),   # w3 (lane-padded)
            pl.BlockSpec((1, _OUT_PAD), const_map),   # b3 (lane-padded)
        ],
        out_specs=pl.BlockSpec((TB, _OUT_PAD), row_map),
        compiler_params=pltpu.CompilerParams(
            dimension_semantics=("parallel",)),
        cost_estimate=pl.CostEstimate(
            flops=flops, transcendentals=transcendentals,
            bytes_accessed=bytes_accessed),
    )(xp, params["gamma"], params["beta"],
      params["w1"], params["b1"], params["w2"], params["b2"], w3p, b3p)

    return out[:B, :1]


def init_valuenet_params(key, input_dim, hidden_size):
    """Mimics nn.Linear default U(-1/sqrt(fan_in), 1/sqrt(fan_in)) and
    nn.LayerNorm default (gamma=1, beta=0).  Weights stored (in, out)."""
    def linear(k, fan_in, fan_out):
        kw, kb = jax.random.split(k)
        bound = 1.0 / math.sqrt(fan_in)
        w = jax.random.uniform(kw, (fan_in, fan_out), jnp.float32, -bound, bound)
        b = jax.random.uniform(kb, (1, fan_out), jnp.float32, -bound, bound)
        return w, b

    k1, k2, k3 = jax.random.split(key, 3)
    w1, b1 = linear(k1, input_dim, hidden_size)
    w2, b2 = linear(k2, hidden_size, hidden_size)
    w3, b3 = linear(k3, hidden_size, 1)
    gamma = jnp.ones((1, input_dim), jnp.float32)
    beta = jnp.zeros((1, input_dim), jnp.float32)
    return dict(gamma=gamma, beta=beta, w1=w1, b1=b1, w2=w2, b2=b2, w3=w3, b3=b3)


def ppo_valuenet_reference(x, params, eps=_LN_EPS):
    """Pure-JAX reference for correctness checking."""
    x = x.astype(jnp.float32)
    mean = jnp.mean(x, axis=-1, keepdims=True)
    var = jnp.mean(jnp.square(x - mean), axis=-1, keepdims=True)
    xn = (x - mean) / jnp.sqrt(var + eps)
    xn = xn * params["gamma"] + params["beta"]
    h1 = _new_gelu(xn @ params["w1"] + params["b1"])
    h2 = _new_gelu(h1 @ params["w2"] + params["b2"])
    return h2 @ params["w3"] + params["b3"]


if __name__ == "__main__":
    # Small shapes consistent with the module: batch=8, input_dim=16, hidden=64.
    B, INPUT_DIM, HIDDEN = 8, 16, 64

    key = jax.random.PRNGKey(0)
    k_params, k_x = jax.random.split(key)

    params = init_valuenet_params(k_params, INPUT_DIM, HIDDEN)
    x = jax.random.normal(k_x, (B, INPUT_DIM), dtype=jnp.float32)

    v = ppo_valuenet_forward(x, params)
    jax.block_until_ready(v)

    v_ref = ppo_valuenet_reference(x, params)
    assert v.shape == (B, 1)
    assert jnp.allclose(v, v_ref, atol=1e-4, rtol=1e-4), float(jnp.max(jnp.abs(v - v_ref)))

    print("KERNEL_OK")
</pallas_src>

<mosaic_0001>
module attributes {stable_mosaic.version = 11 : i64} {
  func.func @_value_kernel(%arg0: i32, %arg1: memref<8x16xf32, #tpu.memory_space<vmem>>, %arg2: memref<1x16xf32, #tpu.memory_space<vmem>>, %arg3: memref<1x16xf32, #tpu.memory_space<vmem>>, %arg4: memref<16x64xf32, #tpu.memory_space<vmem>>, %arg5: memref<1x64xf32, #tpu.memory_space<vmem>>, %arg6: memref<64x64xf32, #tpu.memory_space<vmem>>, %arg7: memref<1x64xf32, #tpu.memory_space<vmem>>, %arg8: memref<64x128xf32, #tpu.memory_space<vmem>>, %arg9: memref<1x128xf32, #tpu.memory_space<vmem>>, %arg10: memref<8x128xf32, #tpu.memory_space<vmem>>) attributes {dimension_semantics = [#tpu.dimension_semantics<parallel>], iteration_bounds = array<i64: 1>, scalar_prefetch = 0 : i64, scratch_operands = 0 : i64, tpu.core_type = #tpu.core_type<tc>, window_params = [{transform_indices = @transform_0, window_bounds = array<i64: 8, 16>}, {pipeline_mode = #tpu.pipeline_mode<synchronous>, transform_indices = @transform_1, window_bounds = array<i64: 1, 16>}, {pipeline_mode = #tpu.pipeline_mode<synchronous>, transform_indices = @transform_2, window_bounds = array<i64: 1, 16>}, {pipeline_mode = #tpu.pipeline_mode<synchronous>, transform_indices = @transform_3, window_bounds = array<i64: 16, 64>}, {pipeline_mode = #tpu.pipeline_mode<synchronous>, transform_indices = @transform_4, window_bounds = array<i64: 1, 64>}, {pipeline_mode = #tpu.pipeline_mode<synchronous>, transform_indices = @transform_5, window_bounds = array<i64: 64, 64>}, {pipeline_mode = #tpu.pipeline_mode<synchronous>, transform_indices = @transform_6, window_bounds = array<i64: 1, 64>}, {pipeline_mode = #tpu.pipeline_mode<synchronous>, transform_indices = @transform_7, window_bounds = array<i64: 64, 128>}, {pipeline_mode = #tpu.pipeline_mode<synchronous>, transform_indices = @transform_8, window_bounds = array<i64: 1, 128>}, {transform_indices = @transform_9, window_bounds = array<i64: 8, 128>}]} {
    %c0 = arith.constant 0 : index
    %c0_0 = arith.constant 0 : index
    %0 = vector.load %arg1[%c0, %c0_0] : memref<8x16xf32, #tpu.memory_space<vmem>>, vector<8x16xf32>
    %cst = arith.constant dense<0.000000e+00> : vector<8xf32>
    %1 = vector.multi_reduction <add>, %0, %cst [1] : vector<8x16xf32> to vector<8xf32>
    %2 = vector.shape_cast %1 : vector<8xf32> to vector<8x1xf32>
    %cst_1 = arith.constant 1.600000e+01 : f32
    %3 = vector.broadcast %cst_1 : f32 to vector<8x1xf32>
    %4 = arith.divf %2, %3 : vector<8x1xf32>
    %5 = vector.broadcast %4 : vector<8x1xf32> to vector<8x16xf32>
    %6 = arith.subf %0, %5 : vector<8x16xf32>
    %7 = arith.mulf %6, %6 : vector<8x16xf32>
    %cst_2 = arith.constant dense<0.000000e+00> : vector<8xf32>
    %8 = vector.multi_reduction <add>, %7, %cst_2 [1] : vector<8x16xf32> to vector<8xf32>
    %9 = vector.shape_cast %8 : vector<8xf32> to vector<8x1xf32>
    %cst_3 = arith.constant 1.600000e+01 : f32
    %10 = vector.broadcast %cst_3 : f32 to vector<8x1xf32>
    %11 = arith.divf %9, %10 : vector<8x1xf32>
    %12 = vector.broadcast %4 : vector<8x1xf32> to vector<8x16xf32>
    %13 = arith.subf %0, %12 : vector<8x16xf32>
    %cst_4 = arith.constant 9.99999974E-6 : f32
    %14 = vector.broadcast %cst_4 : f32 to vector<8x1xf32>
    %15 = arith.addf %11, %14 : vector<8x1xf32>
    %16 = math.rsqrt %15 : vector<8x1xf32>
    %17 = vector.broadcast %16 : vector<8x1xf32> to vector<8x16xf32>
    %18 = arith.mulf %13, %17 : vector<8x16xf32>
    %c0_5 = arith.constant 0 : index
    %c0_6 = arith.constant 0 : index
    %19 = vector.load %arg2[%c0_5, %c0_6] : memref<1x16xf32, #tpu.memory_space<vmem>>, vector<1x16xf32>
    %20 = vector.broadcast %19 : vector<1x16xf32> to vector<8x16xf32>
    %21 = arith.mulf %18, %20 : vector<8x16xf32>
    %c0_7 = arith.constant 0 : index
    %c0_8 = arith.constant 0 : index
    %22 = vector.load %arg3[%c0_7, %c0_8] : memref<1x16xf32, #tpu.memory_space<vmem>>, vector<1x16xf32>
    %23 = vector.broadcast %22 : vector<1x16xf32> to vector<8x16xf32>
    %24 = arith.addf %21, %23 : vector<8x16xf32>
    %c0_9 = arith.constant 0 : index
    %c0_10 = arith.constant 0 : index
    %25 = vector.load %arg5[%c0_9, %c0_10] : memref<1x64xf32, #tpu.memory_space<vmem>>, vector<1x64xf32>
    %c0_11 = arith.constant 0 : index
    %c0_12 = arith.constant 0 : index
    %26 = vector.load %arg7[%c0_11, %c0_12] : memref<1x64xf32, #tpu.memory_space<vmem>>, vector<1x64xf32>
    %c0_13 = arith.constant 0 : index
    %c0_14 = arith.constant 0 : index
    %27 = vector.load %arg9[%c0_13, %c0_14] : memref<1x128xf32, #tpu.memory_space<vmem>>, vector<1x128xf32>
    %c0_15 = arith.constant 0 : index
    %c0_16 = arith.constant 0 : index
    %28 = vector.load %arg4[%c0_15, %c0_16] : memref<16x64xf32, #tpu.memory_space<vmem>>, vector<16x64xf32>
    %cst_17 = arith.constant dense<0.000000e+00> : vector<8x64xf32>
    %29 = tpu.matmul %24, %28, %cst_17 {dimension_numbers = #tpu.dot_dimension_numbers<[1], [0], [0], [1], [0, 0, 1, 1], [], []>} : vector<8x16xf32>, vector<16x64xf32>, vector<8x64xf32> -> vector<8x64xf32>
    %30 = vector.broadcast %25 : vector<1x64xf32> to vector<8x64xf32>
    %31 = arith.addf %29, %30 : vector<8x64xf32>
    %cst_18 = arith.constant 5.000000e-01 : f32
    %32 = vector.broadcast %cst_18 : f32 to vector<8x64xf32>
    %33 = arith.mulf %32, %31 : vector<8x64xf32>
    %cst_19 = arith.constant 4.471500e-02 : f32
    %34 = vector.broadcast %cst_19 : f32 to vector<8x64xf32>
    %35 = arith.mulf %34, %31 : vector<8x64xf32>
    %36 = arith.mulf %35, %31 : vector<8x64xf32>
    %37 = arith.mulf %36, %31 : vector<8x64xf32>
    %38 = arith.addf %31, %37 : vector<8x64xf32>
    %cst_20 = arith.constant 0.797884583 : f32
    %39 = vector.broadcast %cst_20 : f32 to vector<8x64xf32>
    %40 = arith.mulf %39, %38 : vector<8x64xf32>
    %41 = math.tanh %40 : vector<8x64xf32>
    %cst_21 = arith.constant 1.000000e+00 : f32
    %42 = vector.broadcast %cst_21 : f32 to vector<8x64xf32>
    %43 = arith.addf %42, %41 : vector<8x64xf32>
    %44 = arith.mulf %33, %43 : vector<8x64xf32>
    %c0_22 = arith.constant 0 : index
    %c0_23 = arith.constant 0 : index
    %45 = vector.load %arg6[%c0_22, %c0_23] : memref<64x64xf32, #tpu.memory_space<vmem>>, vector<64x64xf32>
    %cst_24 = arith.constant dense<0.000000e+00> : vector<8x64xf32>
    %46 = tpu.matmul %44, %45, %cst_24 {dimension_numbers = #tpu.dot_dimension_numbers<[1], [0], [0], [1], [0, 0, 1, 1], [], []>} : vector<8x64xf32>, vector<64x64xf32>, vector<8x64xf32> -> vector<8x64xf32>
    %47 = vector.broadcast %26 : vector<1x64xf32> to vector<8x64xf32>
    %48 = arith.addf %46, %47 : vector<8x64xf32>
    %cst_25 = arith.constant 5.000000e-01 : f32
    %49 = vector.broadcast %cst_25 : f32 to vector<8x64xf32>
    %50 = arith.mulf %49, %48 : vector<8x64xf32>
    %cst_26 = arith.constant 4.471500e-02 : f32
    %51 = vector.broadcast %cst_26 : f32 to vector<8x64xf32>
    %52 = arith.mulf %51, %48 : vector<8x64xf32>
    %53 = arith.mulf %52, %48 : vector<8x64xf32>
    %54 = arith.mulf %53, %48 : vector<8x64xf32>
    %55 = arith.addf %48, %54 : vector<8x64xf32>
    %cst_27 = arith.constant 0.797884583 : f32
    %56 = vector.broadcast %cst_27 : f32 to vector<8x64xf32>
    %57 = arith.mulf %56, %55 : vector<8x64xf32>
    %58 = math.tanh %57 : vector<8x64xf32>
    %cst_28 = arith.constant 1.000000e+00 : f32
    %59 = vector.broadcast %cst_28 : f32 to vector<8x64xf32>
    %60 = arith.addf %59, %58 : vector<8x64xf32>
    %61 = arith.mulf %50, %60 : vector<8x64xf32>
    %c0_29 = arith.constant 0 : index
    %c0_30 = arith.constant 0 : index
    %62 = vector.load %arg8[%c0_29, %c0_30] : memref<64x128xf32, #tpu.memory_space<vmem>>, vector<64x128xf32>
    %cst_31 = arith.constant dense<0.000000e+00> : vector<8x128xf32>
    %63 = tpu.matmul %61, %62, %cst_31 {dimension_numbers = #tpu.dot_dimension_numbers<[1], [0], [0], [1], [0, 0, 1, 1], [], []>} : vector<8x64xf32>, vector<64x128xf32>, vector<8x128xf32> -> vector<8x128xf32>
    %64 = vector.broadcast %27 : vector<1x128xf32> to vector<8x128xf32>
    %65 = arith.addf %63, %64 : vector<8x128xf32>
    %c0_32 = arith.constant 0 : index
    %c0_33 = arith.constant 0 : index
    %66 = vector.load %arg10[%c0_32, %c0_33] : memref<8x128xf32, #tpu.memory_space<vmem>>, vector<8x128xf32>
    tpu.vector_store %arg10[%c0_32, %c0_33], %65 {strides = array<i32>} : memref<8x128xf32, #tpu.memory_space<vmem>>, vector<8x128xf32>,
    return
  }
  func.func @transform_0(%arg0: i32) -> (i32, i32) {
    %c0_i32 = arith.constant 0 : i32
    %c0_i32_0 = arith.constant 0 : i32
    return %arg0, %c0_i32 : i32, i32
  }
  func.func @transform_1(%arg0: i32) -> (i32, i32) {
    %c0_i32 = arith.constant 0 : i32
    %c0_i32_0 = arith.constant 0 : i32
    %c0_i32_1 = arith.constant 0 : i32
    return %c0_i32, %c0_i32_0 : i32, i32
  }
  func.func @transform_2(%arg0: i32) -> (i32, i32) {
    %c0_i32 = arith.constant 0 : i32
    %c0_i32_0 = arith.constant 0 : i32
    %c0_i32_1 = arith.constant 0 : i32
    return %c0_i32, %c0_i32_0 : i32, i32
  }
  func.func @transform_3(%arg0: i32) -> (i32, i32) {
    %c0_i32 = arith.constant 0 : i32
    %c0_i32_0 = arith.constant 0 : i32
    %c0_i32_1 = arith.constant 0 : i32
    return %c0_i32, %c0_i32_0 : i32, i32
  }
  func.func @transform_4(%arg0: i32) -> (i32, i32) {
    %c0_i32 = arith.constant 0 : i32
    %c0_i32_0 = arith.constant 0 : i32
    %c0_i32_1 = arith.constant 0 : i32
    return %c0_i32, %c0_i32_0 : i32, i32
  }
  func.func @transform_5(%arg0: i32) -> (i32, i32) {
    %c0_i32 = arith.constant 0 : i32
    %c0_i32_0 = arith.constant 0 : i32
    %c0_i32_1 = arith.constant 0 : i32
    return %c0_i32, %c0_i32_0 : i32, i32
  }
  func.func @transform_6(%arg0: i32) -> (i32, i32) {
    %c0_i32 = arith.constant 0 : i32
    %c0_i32_0 = arith.constant 0 : i32
    %c0_i32_1 = arith.constant 0 : i32
    return %c0_i32, %c0_i32_0 : i32, i32
  }
  func.func @transform_7(%arg0: i32) -> (i32, i32) {
    %c0_i32 = arith.constant 0 : i32
    %c0_i32_0 = arith.constant 0 : i32
    %c0_i32_1 = arith.constant 0 : i32
    return %c0_i32, %c0_i32_0 : i32, i32
  }
  func.func @transform_8(%arg0: i32) -> (i32, i32) {
    %c0_i32 = arith.constant 0 : i32
    %c0_i32_0 = arith.constant 0 : i32
    %c0_i32_1 = arith.constant 0 : i32
    return %c0_i32, %c0_i32_0 : i32, i32
  }
  func.func @transform_9(%arg0: i32) -> (i32, i32) {
    %c0_i32 = arith.constant 0 : i32
    %c0_i32_0 = arith.constant 0 : i32
    return %arg0, %c0_i32 : i32, i32
  }
}

</mosaic_0001>

<llo_original>
// kernel: tpu_custom_call.1
$region0: #{tpu_custom_call.1}
  #allocation0 [shape = 'u32[]', space=smem, size = 0x4, offset = 0x4, fixed_abs, tag = 'smem constant byte address 0x4 - core index']
  #allocation1 [shape = 'u32[144,128]{1,0:T(1,128)}', space=vmem, size = 0x12000, scoped, tag = 'internal scratch']
  %s0 = inlined_call_operand.hbm [shape: f32[8,16], index: 0, kind: input, shape index: {}]
  %s1 = inlined_call_operand.vmem [shape: f32[1,16], index: 1, kind: input, shape index: {}]
  %s2 = inlined_call_operand.vmem [shape: f32[1,16], index: 2, kind: input, shape index: {}]
  %s3 = inlined_call_operand.hbm [shape: f32[16,64], index: 3, kind: input, shape index: {}]
  %s4 = inlined_call_operand.vmem [shape: f32[1,64], index: 4, kind: input, shape index: {}]
  %s5 = inlined_call_operand.hbm [shape: f32[64,64], index: 5, kind: input, shape index: {}]
  %s6 = inlined_call_operand.vmem [shape: f32[1,64], index: 6, kind: input, shape index: {}]
  %s7 = inlined_call_operand.hbm [shape: f32[64,128], index: 7, kind: input, shape index: {}]
  %s8 = inlined_call_operand.vmem [shape: f32[1,128], index: 8, kind: input, shape index: {}]
  %s9 = inlined_call_operand.hbm [shape: f32[8,128], index: 9, kind: output, shape index: {}]
  %s10 = sld [smem:[#allocation0]]
  $region62: #{tpu_custom_call.1} parent=0
    _
  %s12 = ssub.s32 1, %s10
  %s13 = scalar_select 0, %s12, %s10
  $region1: #{tpu_custom_call.1} parent=0
    #allocation2 [shape = 'u8[4096]{0}', space=vmem, size = 0x1000, scoped, tag = 'input window, operand 0, single buffered']
    #allocation3 [shape = 's32[1]{0}', space=sflag, size = 0x4, scoped, tag = 'scoped memory for tpu_custom_call.1']
    #allocation4 [shape = 's32[1]{0}', space=sflag, size = 0x4, scoped, tag = 'scoped memory for tpu_custom_call.1']
    #allocation5 [shape = 'u8[8192]{0}', space=vmem, size = 0x2000, scoped, tag = 'input window, operand 3, single buffered']
    #allocation6 [shape = 's32[1]{0}', space=sflag, size = 0x4, scoped, tag = 'scoped memory for tpu_custom_call.1']
    #allocation7 [shape = 'u8[32768]{0}', space=vmem, size = 0x8000, scoped, tag = 'input window, operand 5, single buffered']
    #allocation8 [shape = 'u8[32768]{0}', space=vmem, size = 0x8000, scoped, tag = 'input window, operand 7, single buffered']
    #allocation9 [shape = 's32[1]{0}', space=sflag, size = 0x4, scoped, tag = 'scoped memory for tpu_custom_call.1']
    #allocation10 [shape = 'u8[4096]{0}', space=vmem, size = 0x1000, scoped, tag = 'output window, operand 0, single buffered']
    %14 = vsyncpa [#allocation3], 0
    %15 = vsyncpa [#allocation6], 0
    %16 = vsyncpa [#allocation9], 0
    %17 = vsyncpa [#allocation4], 0
    // Predicated region
    $region2: #{tpu_custom_call.1} parent=1 // pred_check
      _
    $region3: #{tpu_custom_call.1} parent=1 // pred_check_branch
      %19 = sbr.rel (0) target = $region5
    $region4: #{tpu_custom_call.1} parent=1 // pred_region
      %s21 = ssub.s32 128, 128
      %22 = vsyncadd [#allocation3], %s21
      %s24 = sshll.u32 [#allocation2], 4
      %s25 = int_to_ptr.vmem [resolvable:$true] %s24
      %27 = dma.hbm_to_vmem [thread:$0]  %s0, 128, %s25, [#allocation3]
    $region5: #{tpu_custom_call.1} parent=1 // pred_fallthru
      _
    // Predicated region
    $region6: #{tpu_custom_call.1} parent=1 // pred_check
      _
    $region7: #{tpu_custom_call.1} parent=1 // pred_check_branch
      %29 = sbr.rel (0) target = $region9
    $region8: #{tpu_custom_call.1} parent=1 // pred_region
      _
    $region9: #{tpu_custom_call.1} parent=1 // pred_fallthru
      _
    // Predicated region
    $region10: #{tpu_custom_call.1} parent=1 // pred_check
      _
    $region11: #{tpu_custom_call.1} parent=1 // pred_check_branch
      %31 = sbr.rel (0) target = $region13
    $region12: #{tpu_custom_call.1} parent=1 // pred_region
      _
    $region13: #{tpu_custom_call.1} parent=1 // pred_fallthru
      _
    // Predicated region
    $region14: #{tpu_custom_call.1} parent=1 // pred_check
      _
    $region15: #{tpu_custom_call.1} parent=1 // pred_check_branch
      %33 = sbr.rel (0) target = $region17
    $region16: #{tpu_custom_call.1} parent=1 // pred_region
      %s35 = ssub.s32 256, 256
      %36 = vsyncadd [#allocation6], %s35
      %s37 = sshll.u32 [#allocation5], 4
      %s38 = int_to_ptr.vmem [resolvable:$true] %s37
      %43 = dma.hbm_to_vmem [thread:$0]  %s3, 256, %s38, [#allocation6], 128, 128, 8
    $region17: #{tpu_custom_call.1} parent=1 // pred_fallthru
      _
    // Predicated region
    $region18: #{tpu_custom_call.1} parent=1 // pred_check
      _
    $region19: #{tpu_custom_call.1} parent=1 // pred_check_branch
      %45 = sbr.rel (0) target = $region21
    $region20: #{tpu_custom_call.1} parent=1 // pred_region
      _
    $region21: #{tpu_custom_call.1} parent=1 // pred_fallthru
      _
    // Predicated region
    $region22: #{tpu_custom_call.1} parent=1 // pred_check
      _
    $region23: #{tpu_custom_call.1} parent=1 // pred_check_branch
      %47 = sbr.rel (0) target = $region25
    $region24: #{tpu_custom_call.1} parent=1 // pred_region
      %s49 = ssub.s32 1024, 1024
      %50 = vsyncadd [#allocation6], %s49
      %s51 = sshll.u32 [#allocation7], 4
      %s52 = int_to_ptr.vmem [resolvable:$true] %s51
      %57 = dma.hbm_to_vmem [thread:$0]  %s5, 1024, %s52, [#allocation6], 128, 128, 8
    $region25: #{tpu_custom_call.1} parent=1 // pred_fallthru
      _
    // Predicated region
    $region26: #{tpu_custom_call.1} parent=1 // pred_check
      _
    $region27: #{tpu_custom_call.1} parent=1 // pred_check_branch
      %59 = sbr.rel (0) target = $region29
    $region28: #{tpu_custom_call.1} parent=1 // pred_region
      _
    $region29: #{tpu_custom_call.1} parent=1 // pred_fallthru
      _
    // Predicated region
    $region30: #{tpu_custom_call.1} parent=1 // pred_check
      _
    $region31: #{tpu_custom_call.1} parent=1 // pred_check_branch
      %61 = sbr.rel (0) target = $region33
    $region32: #{tpu_custom_call.1} parent=1 // pred_region
      %s63 = ssub.s32 1024, 1024
      %64 = vsyncadd [#allocation9], %s63
      %s65 = sshll.u32 [#allocation8], 4
      %s66 = int_to_ptr.vmem [resolvable:$true] %s65
      %71 = dma.hbm_to_vmem [thread:$0]  %s7, 1024, %s66, [#allocation9], 128, 128, 8
    $region33: #{tpu_custom_call.1} parent=1 // pred_fallthru
      _
    // Predicated region
    $region34: #{tpu_custom_call.1} parent=1 // pred_check
      _
    $region35: #{tpu_custom_call.1} parent=1 // pred_check_branch
      %73 = sbr.rel (0) target = $region37
    $region36: #{tpu_custom_call.1} parent=1 // pred_region
      _
    $region37: #{tpu_custom_call.1} parent=1 // pred_fallthru
      _
    // Predicated region
    $region38: #{tpu_custom_call.1} parent=1 // pred_check
      _
    $region39: #{tpu_custom_call.1} parent=1 // pred_check_branch
      %75 = sbr.rel (0) target = $region41
    $region40: #{tpu_custom_call.1} parent=1 // pred_region
      %76 = dma.done [#allocation3], 128
    $region41: #{tpu_custom_call.1} parent=1 // pred_fallthru
      _
    // Predicated region
    $region42: #{tpu_custom_call.1} parent=1 // pred_check
      _
    $region43: #{tpu_custom_call.1} parent=1 // pred_check_branch
      %78 = sbr.rel (0) target = $region45
    $region44: #{tpu_custom_call.1} parent=1 // pred_region
      %79 = dma.done [#allocation6], 256
    $region45: #{tpu_custom_call.1} parent=1 // pred_fallthru
      _
    // Predicated region
    $region46: #{tpu_custom_call.1} parent=1 // pred_check
      _
    $region47: #{tpu_custom_call.1} parent=1 // pred_check_branch
      %81 = sbr.rel (0) target = $region49
    $region48: #{tpu_custom_call.1} parent=1 // pred_region
      %82 = dma.done [#allocation6], 1024
    $region49: #{tpu_custom_call.1} parent=1 // pred_fallthru
      _
    // Predicated region
    $region50: #{tpu_custom_call.1} parent=1 // pred_check
      _
    $region51: #{tpu_custom_call.1} parent=1 // pred_check_branch
      %84 = sbr.rel (0) target = $region53
    $region52: #{tpu_custom_call.1} parent=1 // pred_region
      %85 = dma.done [#allocation9], 1024
    $region53: #{tpu_custom_call.1} parent=1 // pred_fallthru
      _
    %v86 = vld [vmem:[#allocation2] sm:$0xff]
    %vm87 = vcmask 130048
    %v88 = vsel %vm87, %v86, 0.0
    %89 = vadd.xlane.f32.xlu0 %v88
    %v90 = vpop.xlane.xlu0 %89
    %v91 = vrcp.pop 16.0
    %v92 = vmul.f32 %v90, %v91
    %v93 = vsub.f32 %v86, %v92
    %v94 = vmul.f32 %v93, %v93
    %v95 = vsel %vm87, %v94, 0.0
    %96 = vadd.xlane.f32.xlu0 %v95
    %v97 = vpop.xlane.xlu0 %96
    %v98 = vmul.f32 %v97, %v91
    %v99 = vadd.f32 %v98, 1e-05
    %v100 = vrsqrt.pop %v99
    %v101 = vmul.f32 %v93, %v100
    %v102 = vld [vmem:[%s1] sm:$0x1]
    %v104 = vlaneseq
    %v105 = vshrl.u32 %v104, 7
    %v106 = vsub.s32 0, %v105
    %v107 = vrot.slane %v102, %v106
    %v109 = vmul.f32 %v101, %v107
    %v110 = vld [vmem:[%s2] sm:$0x1]
    %v112 = vlaneseq
    %v113 = vshrl.u32 %v112, 7
    %v114 = vsub.s32 0, %v113
    %v115 = vrot.slane %v110, %v114
    %v117 = vadd.f32 %v109, %v115
    %v118 = vld [vmem:[%s4] sm:$0x1]
    %v119 = vld [vmem:[%s6] sm:$0x1]
    %v120 = vld [vmem:[%s8] sm:$0x1]
    %v121 = vld [vmem:[#allocation5] sm:$0xff]
    %v122 = vld [vmem:[#allocation5 + $0x8] sm:$0xff]
    %v124 = vlaneseq
    %v125 = vshrl.u32 %v124, 7
    %v126 = vsub.s32 0, %v125
    %v127 = vrot.slane %v118, %v126
    %v130 = vsel %vm87, %v117, 0
    %132 = vmatprep.subr.mxu0 0.0
    %133 = vmatpush1.msra.mxu0 %v121
    %134 = vmatprep.subr.mxu0 0.0
    %135 = vmatpush1.msra.mxu0 %v122
    %136 = vmatprep.subr.mxu0 0.0
    %137 = vmatpush1.msra.mxu0 0.0
    %138 = vmatprep.subr.mxu0 0.0
    %139 = vmatpush1.msra.mxu0 0.0
    %140 = vmatprep.subr.mxu0 0.0
    %141 = vmatpush1.msra.mxu0 0.0
    %142 = vmatprep.subr.mxu0 0.0
    %143 = vmatpush1.msra.mxu0 0.0
    %144 = vmatprep.subr.mxu0 0.0
    %145 = vmatpush1.msra.mxu0 0.0
    %146 = vmatprep.subr.mxu0 0.0
    %147 = vmatpush1.msra.mxu0 0.0
    %148 = vmatprep.subr.mxu0 0.0
    %149 = vmatpush1.msra.mxu0 0.0
    %150 = vmatprep.subr.mxu0 0.0
    %151 = vmatpush1.msra.mxu0 0.0
    %152 = vmatprep.subr.mxu0 0.0
    %153 = vmatpush1.msra.mxu0 0.0
    %154 = vmatprep.subr.mxu0 0.0
    %155 = vmatpush1.msra.mxu0 0.0
    %156 = vmatprep.subr.mxu0 0.0
    %157 = vmatpush1.msra.mxu0 0.0
    %158 = vmatprep.subr.mxu0 0.0
    %159 = vmatpush1.msra.mxu0 0.0
    %160 = vmatprep.subr.mxu0 0.0
    %161 = vmatpush1.msra.mxu0 0.0
    %162 = vmatprep.subr.mxu0 0.0
    %163 = vmatpush1.msra.mxu0 0.0
    %164 = vmatprep.subr.mxu0 0.0
    %165 = vmatpush1.msra.mxu0 0.0
    %166 = vmatprep.subr.mxu0 0.0
    %167 = vmatpush1.msra.mxu0 0.0
    %168 = vmatprep.subr.mxu0 0.0
    %169 = vmatpush1.msra.mxu0 0.0
    %170 = vmatprep.subr.mxu0 0.0
    %171 = vmatpush1.msra.mxu0 0.0
    %172 = vmatprep.subr.mxu0 0.0
    %173 = vmatpush1.msra.mxu0 0.0
    %174 = vmatprep.subr.mxu0 0.0
    %175 = vmatpush1.msra.mxu0 0.0
    %176 = vmatprep.subr.mxu0 0.0
    %177 = vmatpush1.msra.mxu0 0.0
    %178 = vmatprep.subr.mxu0 0.0
    %179 = vmatpush1.msra.mxu0 0.0
    %180 = vmatprep.subr.mxu0 0.0
    %181 = vmatpush1.msra.mxu0 0.0
    %182 = vmatprep.subr.mxu0 0.0
    %183 = vmatpush1.msra.mxu0 0.0
    %184 = vmatprep.subr.mxu0 0.0
    %185 = vmatpush1.msra.mxu0 0.0
    %186 = vmatprep.subr.mxu0 0.0
    %187 = vmatpush1.msra.mxu0 0.0
    %188 = vmatprep.subr.mxu0 0.0
    %189 = vmatpush1.msra.mxu0 0.0
    %190 = vmatprep.subr.mxu0 0.0
    %191 = vmatpush1.msra.mxu0 0.0
    %192 = vmatprep.subr.mxu0 0.0
    %193 = vmatpush1.msra.mxu0 0.0
    %194 = vmatprep.subr.mxu0 0.0
    %195 = vmatpush1.msra.mxu0 0.0
    %196 = vmatprep.mubr.f32.mxu0 0.0
    %197 = vmatmul.mubr.f32.gmra.mrb[0].mxu0 %v130
    %v198 = vpop.f32.mrb[0].mxu0
    %v199 = vadd.f32 %v127, %v198
    %v200 = vpop.f32.mrb[0].mxu0
    %201 = vdwg.mxu0
    %v202 = vmul.f32 %v199, 0.5
    %v203 = vmul.f32 %v199, 0.044715
    %v204 = vmul.f32 %v203, %v199
    %v205 = vmul.f32 %v204, %v199
    %v206 = vadd.f32 %v199, %v205
    %v207 = vmul.f32 %v206, 0.7978846
    %v208 = vtanh.pop %v207
    %v209 = vadd.f32 %v208, 1.0
    %v210 = vmul.f32 %v202, %v209
    %v211 = vld [vmem:[#allocation7] sm:$0xff]
    %v212 = vld [vmem:[#allocation7 + $0x8] sm:$0xff]
    %v213 = vld [vmem:[#allocation7 + $0x10] sm:$0xff]
    %v214 = vld [vmem:[#allocation7 + $0x18] sm:$0xff]
    %v215 = vld [vmem:[#allocation7 + $0x20] sm:$0xff]
    %v216 = vld [vmem:[#allocation7 + $0x28] sm:$0xff]
    %v217 = vld [vmem:[#allocation7 + $0x30] sm:$0xff]
    %v218 = vld [vmem:[#allocation7 + $0x38] sm:$0xff]
    %v220 = vlaneseq
    %v221 = vshrl.u32 %v220, 7
    %v222 = vsub.s32 0, %v221
    %v223 = vrot.slane %v119, %v222
    %vm225 = vcmask 523264
    %v227 = vsel %vm225, %v210, 0
    %229 = vmatprep.subr.mxu0 0.0
    %230 = vmatpush1.msra.mxu0 %v211
    %231 = vmatprep.subr.mxu0 0.0
    %232 = vmatpush1.msra.mxu0 %v212
    %233 = vmatprep.subr.mxu0 0.0
    %234 = vmatpush1.msra.mxu0 %v213
    %235 = vmatprep.subr.mxu0 0.0
    %236 = vmatpush1.msra.mxu0 %v214
    %237 = vmatprep.subr.mxu0 0.0
    %238 = vmatpush1.msra.mxu0 %v215
    %239 = vmatprep.subr.mxu0 0.0
    %240 = vmatpush1.msra.mxu0 %v216
    %241 = vmatprep.subr.mxu0 0.0
    %242 = vmatpush1.msra.mxu0 %v217
    %243 = vmatprep.subr.mxu0 0.0
    %244 = vmatpush1.msra.mxu0 %v218
    %245 = vmatprep.subr.mxu0 0.0
    %246 = vmatpush1.msra.mxu0 0.0
    %247 = vmatprep.subr.mxu0 0.0
    %248 = vmatpush1.msra.mxu0 0.0
    %249 = vmatprep.subr.mxu0 0.0
    %250 = vmatpush1.msra.mxu0 0.0
    %251 = vmatprep.subr.mxu0 0.0
    %252 = vmatpush1.msra.mxu0 0.0
    %253 = vmatprep.subr.mxu0 0.0
    %254 = vmatpush1.msra.mxu0 0.0
    %255 = vmatprep.subr.mxu0 0.0
    %256 = vmatpush1.msra.mxu0 0.0
    %257 = vmatprep.subr.mxu0 0.0
    %258 = vmatpush1.msra.mxu0 0.0
    %259 = vmatprep.subr.mxu0 0.0
    %260 = vmatpush1.msra.mxu0 0.0
    %261 = vmatprep.subr.mxu0 0.0
    %262 = vmatpush1.msra.mxu0 0.0
    %263 = vmatprep.subr.mxu0 0.0
    %264 = vmatpush1.msra.mxu0 0.0
    %265 = vmatprep.subr.mxu0 0.0
    %266 = vmatpush1.msra.mxu0 0.0
    %267 = vmatprep.subr.mxu0 0.0
    %268 = vmatpush1.msra.mxu0 0.0
    %269 = vmatprep.subr.mxu0 0.0
    %270 = vmatpush1.msra.mxu0 0.0
    %271 = vmatprep.subr.mxu0 0.0
    %272 = vmatpush1.msra.mxu0 0.0
    %273 = vmatprep.subr.mxu0 0.0
    %274 = vmatpush1.msra.mxu0 0.0
    %275 = vmatprep.subr.mxu0 0.0
    %276 = vmatpush1.msra.mxu0 0.0
    %277 = vmatprep.subr.mxu0 0.0
    %278 = vmatpush1.msra.mxu0 0.0
    %279 = vmatprep.subr.mxu0 0.0
    %280 = vmatpush1.msra.mxu0 0.0
    %281 = vmatprep.subr.mxu0 0.0
    %282 = vmatpush1.msra.mxu0 0.0
    %283 = vmatprep.subr.mxu0 0.0
    %284 = vmatpush1.msra.mxu0 0.0
    %285 = vmatprep.subr.mxu0 0.0
    %286 = vmatpush1.msra.mxu0 0.0
    %287 = vmatprep.subr.mxu0 0.0
    %288 = vmatpush1.msra.mxu0 0.0
    %289 = vmatprep.subr.mxu0 0.0
    %290 = vmatpush1.msra.mxu0 0.0
    %291 = vmatprep.subr.mxu0 0.0
    %292 = vmatpush1.msra.mxu0 0.0
    %293 = vmatprep.mubr.f32.mxu0 0.0
    %294 = vmatmul.mubr.f32.gmra.mrb[0].mxu0 %v227
    %v295 = vpop.f32.mrb[0].mxu0
    %v296 = vadd.f32 %v223, %v295
    %v297 = vpop.f32.mrb[0].mxu0
    %298 = vdwg.mxu0
    %v299 = vmul.f32 %v296, 0.5
    %v300 = vmul.f32 %v296, 0.044715
    %v301 = vmul.f32 %v300, %v296
    %v302 = vmul.f32 %v301, %v296
    %v303 = vadd.f32 %v296, %v302
    %v304 = vmul.f32 %v303, 0.7978846
    %v305 = vtanh.pop %v304
    %v306 = vadd.f32 %v305, 1.0
    %v307 = vmul.f32 %v299, %v306
    %v308 = vld [vmem:[#allocation8] sm:$0xff]
    %v309 = vld [vmem:[#allocation8 + $0x8] sm:$0xff]
    %v310 = vld [vmem:[#allocation8 + $0x10] sm:$0xff]
    %v311 = vld [vmem:[#allocation8 + $0x18] sm:$0xff]
    %v312 = vld [vmem:[#allocation8 + $0x20] sm:$0xff]
    %v313 = vld [vmem:[#allocation8 + $0x28] sm:$0xff]
    %v314 = vld [vmem:[#allocation8 + $0x30] sm:$0xff]
    %v315 = vld [vmem:[#allocation8 + $0x38] sm:$0xff]
    %v317 = vlaneseq
    %v318 = vshrl.u32 %v317, 7
    %v319 = vsub.s32 0, %v318
    %v320 = vrot.slane %v120, %v319
    %v323 = vsel %vm225, %v307, 0
    %325 = vmatprep.subr.mxu0 0.0
    %326 = vmatpush1.msra.mxu0 %v308
    %327 = vmatprep.subr.mxu0 0.0
    %328 = vmatpush1.msra.mxu0 %v309
    %329 = vmatprep.subr.mxu0 0.0
    %330 = vmatpush1.msra.mxu0 %v310
    %331 = vmatprep.subr.mxu0 0.0
    %332 = vmatpush1.msra.mxu0 %v311
    %333 = vmatprep.subr.mxu0 0.0
    %334 = vmatpush1.msra.mxu0 %v312
    %335 = vmatprep.subr.mxu0 0.0
    %336 = vmatpush1.msra.mxu0 %v313
    %337 = vmatprep.subr.mxu0 0.0
    %338 = vmatpush1.msra.mxu0 %v314
    %339 = vmatprep.subr.mxu0 0.0
    %340 = vmatpush1.msra.mxu0 %v315
    %341 = vmatprep.subr.mxu0 0.0
    %342 = vmatpush1.msra.mxu0 0.0
    %343 = vmatprep.subr.mxu0 0.0
    %344 = vmatpush1.msra.mxu0 0.0
    %345 = vmatprep.subr.mxu0 0.0
    %346 = vmatpush1.msra.mxu0 0.0
    %347 = vmatprep.subr.mxu0 0.0
    %348 = vmatpush1.msra.mxu0 0.0
    %349 = vmatprep.subr.mxu0 0.0
    %350 = vmatpush1.msra.mxu0 0.0
    %351 = vmatprep.subr.mxu0 0.0
    %352 = vmatpush1.msra.mxu0 0.0
    %353 = vmatprep.subr.mxu0 0.0
    %354 = vmatpush1.msra.mxu0 0.0
    %355 = vmatprep.subr.mxu0 0.0
    %356 = vmatpush1.msra.mxu0 0.0
    %357 = vmatprep.subr.mxu0 0.0
    %358 = vmatpush1.msra.mxu0 0.0
    %359 = vmatprep.subr.mxu0 0.0
    %360 = vmatpush1.msra.mxu0 0.0
    %361 = vmatprep.subr.mxu0 0.0
    %362 = vmatpush1.msra.mxu0 0.0
    %363 = vmatprep.subr.mxu0 0.0
    %364 = vmatpush1.msra.mxu0 0.0
    %365 = vmatprep.subr.mxu0 0.0
    %366 = vmatpush1.msra.mxu0 0.0
    %367 = vmatprep.subr.mxu0 0.0
    %368 = vmatpush1.msra.mxu0 0.0
    %369 = vmatprep.subr.mxu0 0.0
    %370 = vmatpush1.msra.mxu0 0.0
    %371 = vmatprep.subr.mxu0 0.0
    %372 = vmatpush1.msra.mxu0 0.0
    %373 = vmatprep.subr.mxu0 0.0
    %374 = vmatpush1.msra.mxu0 0.0
    %375 = vmatprep.subr.mxu0 0.0
    %376 = vmatpush1.msra.mxu0 0.0
    %377 = vmatprep.subr.mxu0 0.0
    %378 = vmatpush1.msra.mxu0 0.0
    %379 = vmatprep.subr.mxu0 0.0
    %380 = vmatpush1.msra.mxu0 0.0
    %381 = vmatprep.subr.mxu0 0.0
    %382 = vmatpush1.msra.mxu0 0.0
    %383 = vmatprep.subr.mxu0 0.0
    %384 = vmatpush1.msra.mxu0 0.0
    %385 = vmatprep.subr.mxu0 0.0
    %386 = vmatpush1.msra.mxu0 0.0
    %387 = vmatprep.subr.mxu0 0.0
    %388 = vmatpush1.msra.mxu0 0.0
    %389 = vmatprep.mubr.f32.mxu0 0.0
    %390 = vmatmul.mubr.f32.gmra.mrb[0].mxu0 %v323
    %v391 = vpop.f32.mrb[0].mxu0
    %v392 = vadd.f32 %v320, %v391
    %v393 = vpop.f32.mrb[0].mxu0
    %394 = vdwg.mxu0
    %395 = vst [vmem:[#allocation10] sm:$0xff] %v392
    // Predicated region
    $region54: #{tpu_custom_call.1} parent=1 // pred_check
      _
    $region55: #{tpu_custom_call.1} parent=1 // pred_check_branch
      %397 = sbr.rel (0) target = $region57
    $region56: #{tpu_custom_call.1} parent=1 // pred_region
      %s399 = ssub.s32 128, 128
      %400 = vsyncadd [#allocation4], %s399
      %s402 = sshll.u32 [#allocation10], 4
      %s403 = int_to_ptr.vmem [resolvable:$true] %s402
      %405 = dma.vmem_to_hbm [thread:$0]  %s403, 128, %s9, [#allocation4]
    $region57: #{tpu_custom_call.1} parent=1 // pred_fallthru
      _
    // Predicated region
    $region58: #{tpu_custom_call.1} parent=1 // pred_check
      _
    $region59: #{tpu_custom_call.1} parent=1 // pred_check_branch
      %407 = sbr.rel (0) target = $region61
    $region60: #{tpu_custom_call.1} parent=1 // pred_region
      %408 = dma.done [#allocation4], 128
    $region61: #{tpu_custom_call.1} parent=1 // pred_fallthru
      _
    %409 = vsyncpa [#allocation3], 1
    %410 = vsyncpa [#allocation6], 1
    %411 = vsyncpa [#allocation9], 1
    %412 = vsyncpa [#allocation4], 1

</llo_original>
